<compile_context>
chip_gen: v6e
topology: v6e:2x2x1
jax: 0.10.0
libtpu: 0.0.40
codegen_flags: <defaults>
</compile_context>

<pallas_src>
import functools

import jax
import jax.numpy as jnp
import numpy as np
from jax import lax
from jax.experimental import pallas as pl
from jax.experimental.pallas import tpu as pltpu


# --------------------------------------------------------------------------
# Kernel
# --------------------------------------------------------------------------

def crloss_kernel(scal_ref, lab_row_ref, lab_col_ref, diag_row_ref,
                  diag_col_ref, sim_ref, out_ref,
                  img_total, img_any, txt_acc, txt_found, *, semi):
    """One (TM, B) row block of the similarity matrix.

    scal_ref : (1, 3) f32 SMEM  [margin, image_fallback_loss, text_fallback_loss]
    lab_row  : (1, B) i32       labels[j]
    lab_col  : (TM, 1) i32      labels[i] for the rows of this block
    diag_row : (1, B) f32       sim[j, j]
    diag_col : (TM, 1) f32      sim[i, i] for the rows of this block
    sim      : (TM, B)          similarity row block (any float dtype)
    """
    f32 = jnp.float32
    TM, B = sim_ref.shape
    i = pl.program_id(0)
    last_step = pl.num_programs(0) - 1

    marg = scal_ref[0, 0]
    img_fb = scal_ref[0, 1]
    txt_fb = scal_ref[0, 2]

    sim = sim_ref[...].astype(f32)             # (TM, B)
    lab_row = lab_row_ref[...]                 # (1, B)
    lab_col = lab_col_ref[...]                 # (TM, 1)
    diag_row = diag_row_ref[...]               # (1, B)
    diag_col = diag_col_ref[...]               # (TM, 1)

    big = jnp.int32(B + 1)
    neg_inf = f32(-1e30)
    neg = lab_col != lab_row                   # (TM, B) labels differ (symmetric)

    @pl.when(i == 0)
    def _init():
        out_ref[...] = jnp.zeros((1, 1), f32)
        img_total[...] = jnp.zeros((1, 1), f32)
        img_any[...] = jnp.zeros((1, 1), f32)
        txt_found[...] = jnp.zeros((1, B), f32)
        if semi:
            txt_acc[...] = jnp.zeros((1, B), f32)
        else:
            txt_acc[...] = jnp.full((1, B), neg_inf, f32)

    # image anchors = rows of this block:  loss_img[r, j] = sim[r, j] - sim[r, r] + m
    loss_img = sim - diag_col + marg
    # text anchors = columns, candidates = rows: loss_txt[r, j] = sim[r, j] - sim[j, j] + m
    loss_txt = sim - diag_row + marg

    if semi:
        # TODO(synk): PyTorch picks a *random* valid semi-hard negative
        # (np.random.choice); here we deterministically pick the first one.
        col_ids = lax.broadcasted_iota(jnp.int32, (TM, B), 1)
        row_ids = lax.broadcasted_iota(jnp.int32, (TM, B), 0)

        # --- image side: first (smallest-index) valid semi-hard negative ---
        valid_i = neg & (loss_img < marg) & (loss_img > f32(0.0))
        sel_i = jnp.min(jnp.where(valid_i, col_ids, big), axis=1, keepdims=True)
        exists_i = (sel_i < big).astype(f32)                        # (TM, 1)
        chosen_i = jnp.sum(jnp.where(col_ids == sel_i, loss_img, f32(0.0)),
                           axis=1, keepdims=True)
        contrib_i = jnp.maximum(chosen_i, f32(0.0)) * exists_i

        # --- text side: carry first valid candidate across row blocks ------
        valid_t = neg & (loss_txt < marg) & (loss_txt > f32(0.0))
        sel_t = jnp.min(jnp.where(valid_t, row_ids, big), axis=0, keepdims=True)
        blk_has = (sel_t < big).astype(f32)                         # (1, B)
        blk_loss = jnp.sum(jnp.where(row_ids == sel_t, loss_txt, f32(0.0)),
                           axis=0, keepdims=True)                   # (1, B)
        take = (txt_found[...] == f32(0.0)) & (blk_has > f32(0.0))
        txt_acc[...] = jnp.where(take, blk_loss, txt_acc[...])
        txt_found[...] = jnp.maximum(txt_found[...], blk_has)
    else:
        # --- image side: hard negative == masked row max --------------------
        max_i = jnp.max(jnp.where(neg, loss_img, neg_inf), axis=1, keepdims=True)
        exists_i = ((max_i > marg) & (max_i > f32(0.0))).astype(f32)
        contrib_i = jnp.maximum(max_i, f32(0.0)) * exists_i

        # --- text side: running column max across row blocks ----------------
        blk_max = jnp.max(jnp.where(neg, loss_txt, neg_inf), axis=0, keepdims=True)
        txt_acc[...] = jnp.maximum(txt_acc[...], blk_max)

    img_total[...] += jnp.sum(contrib_i, axis=(0, 1), keepdims=True)
    img_any[...] = jnp.maximum(img_any[...],
                               jnp.max(exists_i, axis=(0, 1), keepdims=True))

    @pl.when(i == last_step)
    def _finalize():
        if semi:
            exists_t = txt_found[...]                               # (1, B)
            contrib_t = jnp.maximum(txt_acc[...], f32(0.0)) * exists_t
        else:
            mx = txt_acc[...]
            exists_t = ((mx > marg) & (mx > f32(0.0))).astype(f32)
            contrib_t = jnp.maximum(mx, f32(0.0)) * exists_t
        txt_total = jnp.sum(contrib_t, axis=(0, 1), keepdims=True)
        txt_any = jnp.max(exists_t, axis=(0, 1), keepdims=True)
        txt_loss = jnp.where(txt_any > f32(0.0), txt_total, txt_fb)
        img_loss = jnp.where(img_any[...] > f32(0.0), img_total[...], img_fb)
        out_ref[...] = img_loss + txt_loss


# --------------------------------------------------------------------------
# Wrapper
# --------------------------------------------------------------------------

def _vmem_cap_bytes():
    """Generation-aware scoped-VMEM cap (75% of capacity; 48 MiB fallback is
    safe on v7x's 64 MiB physical VMEM per TensorCore)."""
    try:
        info = pltpu.get_tpu_info()
        cap = int(getattr(info, "vmem_capacity_bytes", 0) or 0)
        if cap > 0:
            return int(0.75 * cap)
    except Exception:
        pass
    return 48 * 1024 * 1024


def _pick_tm(B, cap_bytes):
    """Largest row-block TM (multiple of 8, dividing B) whose live working set
    (~14 live (TM, B) f32 tiles incl. the double-buffered input) fits."""
    budget = int(0.6 * cap_bytes)
    per_row = 14 * B * 4
    tm_max = max(8, budget // max(per_row, 1))
    if B <= tm_max:
        return B                       # whole matrix in one block
    tm = (tm_max // 8) * 8
    while tm >= 8:
        if B % tm == 0:
            return tm
        tm -= 8
    # TODO(synk): B with no multiple-of-8 divisor under the budget falls back
    # to the whole-matrix form (vmem limit raised below).
    return B


def crloss_forward(similarity, labels, margin_value, semi):
    """JAX/Pallas equivalent of CRLoss.forward(similarity, labels, semi)."""
    B = similarity.shape[0]
    sim = similarity
    if not jnp.issubdtype(sim.dtype, jnp.floating):
        sim = sim.astype(jnp.float32)

    simf = sim.astype(jnp.float32)
    lab = labels.astype(jnp.int32)
    m = jnp.float32(margin_value)

    diag = jnp.diagonal(simf)
    diag_row = diag.reshape(1, B)
    diag_col = diag.reshape(B, 1)
    lab_row = lab.reshape(1, B)
    lab_col = lab.reshape(B, 1)

    # O(B) fallback triplet ([B-1, B-1, first negative of anchor B-1]) for
    # both sides, computed once here instead of inside the kernel.
    idx = jnp.arange(B, dtype=jnp.int32)
    neg_last = lab != lab[B - 1]
    first_neg = jnp.min(jnp.where(neg_last, idx, jnp.int32(B + 1)))
    has_neg = first_neg < jnp.int32(B + 1)
    d_last = simf[B - 1, B - 1]
    img_fb_val = jnp.sum(jnp.where(idx == first_neg, simf[B - 1, :], 0.0)) - d_last + m
    txt_fb_val = jnp.sum(jnp.where(idx == first_neg, simf[:, B - 1], 0.0)) - d_last + m
    # If the last anchor has no negatives at all this contributes 0 (the
    # PyTorch reference would raise on the empty index instead).
    img_fb = jnp.where(has_neg, jnp.maximum(img_fb_val, 0.0), 0.0)
    txt_fb = jnp.where(has_neg, jnp.maximum(txt_fb_val, 0.0), 0.0)
    scalars = jnp.stack([m, img_fb, txt_fb]).reshape(1, 3).astype(jnp.float32)

    cap = _vmem_cap_bytes()
    TM = _pick_tm(B, cap)
    nsteps = B // TM

    itemsize = jnp.dtype(sim.dtype).itemsize
    vmem_need = 2 * TM * B * itemsize + 12 * TM * B * 4 + (2 << 20)
    cp_kwargs = dict(dimension_semantics=("arbitrary",))
    if vmem_need > 16 * 1024 * 1024:
        cp_kwargs["vmem_limit_bytes"] = int(min(vmem_need, cap))

    kern = functools.partial(crloss_kernel, semi=bool(semi))
    out = pl.pallas_call(
        kern,
        out_shape=jax.ShapeDtypeStruct((1, 1), jnp.float32),
        grid=(nsteps,),
        in_specs=[
            pl.BlockSpec((1, 3), lambda i: (0, 0),
                         memory_space=pltpu.MemorySpace.SMEM),   # margin + fallbacks
            pl.BlockSpec((1, B), lambda i: (0, 0)),              # labels, lane-dense
            pl.BlockSpec((TM, 1), lambda i: (i, 0)),             # labels, row block
            pl.BlockSpec((1, B), lambda i: (0, 0)),              # diag, lane-dense
            pl.BlockSpec((TM, 1), lambda i: (i, 0)),             # diag, row block
            pl.BlockSpec((TM, B), lambda i: (i, 0)),             # similarity rows
        ],
        out_specs=pl.BlockSpec((1, 1), lambda i: (0, 0)),
        scratch_shapes=[
            pltpu.VMEM((1, 1), jnp.float32),   # img_total
            pltpu.VMEM((1, 1), jnp.float32),   # img_any
            pltpu.VMEM((1, B), jnp.float32),   # txt_acc (running max / first-valid loss)
            pltpu.VMEM((1, B), jnp.float32),   # txt_found (semi-hard only)
        ],
        compiler_params=pltpu.CompilerParams(**cp_kwargs),
    )(scalars, lab_row, lab_col, diag_row, diag_col, sim)
    return out[0, 0]


# ------------------------- pure-numpy references -------------------------

def _ref_hard_numpy(sim, labels, margin_value):
    """Replicates the PyTorch hard-negative path (deterministic)."""
    sim = np.asarray(sim, np.float32)
    labels = np.asarray(labels)
    B = sim.shape[0]
    marg = np.full(B, margin_value, np.float32)

    def get_triplets(S):
        triplets = []
        negative = None
        for idx in range(B):
            negative = np.where(labels != labels[idx])[0]
            ap_sim = S[idx, idx]
            loss = S[idx, negative] - ap_sim + marg[idx]
            valid = np.where((loss > marg[idx]) & (loss > 0))[0]
            ni = np.argmax(loss) if len(valid) > 0 else None
            if ni is not None:
                triplets.append([idx, idx, negative[ni]])
        if len(triplets) == 0:
            triplets.append([B - 1, B - 1, negative[0]])
        t = np.array(triplets)
        return t, marg[t[:, 0]]

    def side(S):
        t, m = get_triplets(S)
        return np.maximum(m - S[t[:, 0], t[:, 1]] + S[t[:, 0], t[:, 2]], 0).sum()

    return float(side(sim) + side(sim.T))


def _ref_semi_first_numpy(sim, labels, margin_value):
    """Semi-hard path with deterministic first-index choice (kernel behavior;
    the PyTorch module uses np.random.choice instead)."""
    sim = np.asarray(sim, np.float32)
    labels = np.asarray(labels)
    B = sim.shape[0]
    marg = np.full(B, margin_value, np.float32)

    def get_triplets(S):
        triplets = []
        negative = None
        for idx in range(B):
            negative = np.where(labels != labels[idx])[0]
            ap_sim = S[idx, idx]
            loss = S[idx, negative] - ap_sim + marg[idx]
            valid = np.where((loss < marg[idx]) & (loss > 0))[0]
            ni = valid[0] if len(valid) > 0 else None
            if ni is not None:
                triplets.append([idx, idx, negative[ni]])
        if len(triplets) == 0:
            triplets.append([B - 1, B - 1, negative[0]])
        t = np.array(triplets)
        return t, marg[t[:, 0]]

    def side(S):
        t, m = get_triplets(S)
        return np.maximum(m - S[t[:, 0], t[:, 1]] + S[t[:, 0], t[:, 2]], 0).sum()

    return float(side(sim) + side(sim.T))


if __name__ == "__main__":
    B = 8               # batch size (similarity is B x B)
    MARGIN = 0.2        # opt.margin (repeated per-batch in the module)

    key = jax.random.PRNGKey(0)
    k_sim, k_lab = jax.random.split(key)
    similarity = jax.random.normal(k_sim, (B, B), dtype=jnp.float32)
    labels = jax.random.randint(k_lab, (B,), 0, 4, dtype=jnp.int32)

    # Hard-negative path (deterministic in the original module).
    loss_hard = jax.block_until_ready(
        crloss_forward(similarity, labels, MARGIN, semi=False))
    ref_hard = _ref_hard_numpy(np.asarray(similarity), np.asarray(labels), MARGIN)
    assert abs(float(loss_hard) - ref_hard) < 1e-4, (float(loss_hard), ref_hard)

    # Semi-hard path (random choice in the original; deterministic first-index
    # here — checked against the matching deterministic reference).
    loss_semi = jax.block_until_ready(
        crloss_forward(similarity, labels, MARGIN, semi=True))
    ref_semi = _ref_semi_first_numpy(np.asarray(similarity), np.asarray(labels), MARGIN)
    assert abs(float(loss_semi) - ref_semi) < 1e-4, (float(loss_semi), ref_semi)

    print("KERNEL_OK")
</pallas_src>

<mosaic_0001>
module attributes {stable_mosaic.version = 11 : i64} {
  func.func @crloss_kernel(%arg0: i32, %arg1: memref<1x3xf32, #tpu.memory_space<smem>>, %arg2: memref<1x8xi32, #tpu.memory_space<vmem>>, %arg3: memref<8x1xi32, #tpu.memory_space<vmem>>, %arg4: memref<1x8xf32, #tpu.memory_space<vmem>>, %arg5: memref<8x1xf32, #tpu.memory_space<vmem>>, %arg6: memref<8x8xf32, #tpu.memory_space<vmem>>, %arg7: memref<1x1xf32, #tpu.memory_space<vmem>>, %arg8: memref<1x1xf32, #tpu.memory_space<vmem>>, %arg9: memref<1x1xf32, #tpu.memory_space<vmem>>, %arg10: memref<1x8xf32, #tpu.memory_space<vmem>>, %arg11: memref<1x8xf32, #tpu.memory_space<vmem>>) attributes {dimension_semantics = [#tpu.dimension_semantics<arbitrary>], iteration_bounds = array<i64: 1>, scalar_prefetch = 0 : i64, scratch_operands = 4 : i64, tpu.core_type = #tpu.core_type<tc>, window_params = [{transform_indices = @transform_0, window_bounds = array<i64: 1, 3>}, {pipeline_mode = #tpu.pipeline_mode<synchronous>, transform_indices = @transform_1, window_bounds = array<i64: 1, 8>}, {transform_indices = @transform_2, window_bounds = array<i64: 8, 1>}, {pipeline_mode = #tpu.pipeline_mode<synchronous>, transform_indices = @transform_3, window_bounds = array<i64: 1, 8>}, {transform_indices = @transform_4, window_bounds = array<i64: 8, 1>}, {transform_indices = @transform_5, window_bounds = array<i64: 8, 8>}, {pipeline_mode = #tpu.pipeline_mode<synchronous>, transform_indices = @transform_6, window_bounds = array<i64: 1, 1>}]} {
    %c0 = arith.constant 0 : index
    %c0_0 = arith.constant 0 : index
    %0 = memref.load %arg1[%c0, %c0_0] : memref<1x3xf32, #tpu.memory_space<smem>>
    %c0_1 = arith.constant 0 : index
    %c1 = arith.constant 1 : index
    %1 = memref.load %arg1[%c0_1, %c1] : memref<1x3xf32, #tpu.memory_space<smem>>
    %c0_2 = arith.constant 0 : index
    %c2 = arith.constant 2 : index
    %2 = memref.load %arg1[%c0_2, %c2] : memref<1x3xf32, #tpu.memory_space<smem>>
    %c0_3 = arith.constant 0 : index
    %c0_4 = arith.constant 0 : index
    %3 = vector.load %arg6[%c0_3, %c0_4] : memref<8x8xf32, #tpu.memory_space<vmem>>, vector<8x8xf32>
    %c0_5 = arith.constant 0 : index
    %c0_6 = arith.constant 0 : index
    %4 = vector.load %arg2[%c0_5, %c0_6] : memref<1x8xi32, #tpu.memory_space<vmem>>, vector<1x8xi32>
    %c0_7 = arith.constant 0 : index
    %c0_8 = arith.constant 0 : index
    %5 = vector.load %arg3[%c0_7, %c0_8] : memref<8x1xi32, #tpu.memory_space<vmem>>, vector<8x1xi32>
    %c0_9 = arith.constant 0 : index
    %c0_10 = arith.constant 0 : index
    %6 = vector.load %arg4[%c0_9, %c0_10] : memref<1x8xf32, #tpu.memory_space<vmem>>, vector<1x8xf32>
    %c0_11 = arith.constant 0 : index
    %c0_12 = arith.constant 0 : index
    %7 = vector.load %arg5[%c0_11, %c0_12] : memref<8x1xf32, #tpu.memory_space<vmem>>, vector<8x1xf32>
    %8 = vector.broadcast %5 : vector<8x1xi32> to vector<8x8xi32>
    %9 = vector.broadcast %4 : vector<1x8xi32> to vector<8x8xi32>
    %10 = arith.cmpi ne, %8, %9 : vector<8x8xi32>
    %c0_i32 = arith.constant 0 : i32
    %11 = arith.cmpi eq, %arg0, %c0_i32 : i32
    %12 = arith.extui %11 : i1 to i32
    %cst = arith.constant -1.000000e+30 : f32
    %c0_i32_13 = arith.constant 0 : i32
    %13 = arith.cmpi ne, %12, %c0_i32_13 : i32
    scf.if %13 {
      %cst_36 = arith.constant 0.000000e+00 : f32
      %62 = vector.broadcast %cst_36 : f32 to vector<1x1xf32>
      %c0_37 = arith.constant 0 : index
      %c0_38 = arith.constant 0 : index
      %63 = vector.load %arg7[%c0_37, %c0_38] : memref<1x1xf32, #tpu.memory_space<vmem>>, vector<1x1xf32>
      tpu.vector_store %arg7[%c0_37, %c0_38], %62 {strides = array<i32>} : memref<1x1xf32, #tpu.memory_space<vmem>>, vector<1x1xf32>,
      %cst_39 = arith.constant 0.000000e+00 : f32
      %64 = vector.broadcast %cst_39 : f32 to vector<1x1xf32>
      %c0_40 = arith.constant 0 : index
      %c0_41 = arith.constant 0 : index
      %65 = vector.load %arg8[%c0_40, %c0_41] : memref<1x1xf32, #tpu.memory_space<vmem>>, vector<1x1xf32>
      tpu.vector_store %arg8[%c0_40, %c0_41], %64 {strides = array<i32>} : memref<1x1xf32, #tpu.memory_space<vmem>>, vector<1x1xf32>,
      %cst_42 = arith.constant 0.000000e+00 : f32
      %66 = vector.broadcast %cst_42 : f32 to vector<1x1xf32>
      %c0_43 = arith.constant 0 : index
      %c0_44 = arith.constant 0 : index
      %67 = vector.load %arg9[%c0_43, %c0_44] : memref<1x1xf32, #tpu.memory_space<vmem>>, vector<1x1xf32>
      tpu.vector_store %arg9[%c0_43, %c0_44], %66 {strides = array<i32>} : memref<1x1xf32, #tpu.memory_space<vmem>>, vector<1x1xf32>,
      %cst_45 = arith.constant 0.000000e+00 : f32
      %68 = vector.broadcast %cst_45 : f32 to vector<1x8xf32>
      %c0_46 = arith.constant 0 : index
      %c0_47 = arith.constant 0 : index
      %69 = vector.load %arg11[%c0_46, %c0_47] : memref<1x8xf32, #tpu.memory_space<vmem>>, vector<1x8xf32>
      tpu.vector_store %arg11[%c0_46, %c0_47], %68 {strides = array<i32>} : memref<1x8xf32, #tpu.memory_space<vmem>>, vector<1x8xf32>,
      %70 = vector.broadcast %cst : f32 to vector<1x8xf32>
      %c0_48 = arith.constant 0 : index
      %c0_49 = arith.constant 0 : index
      %71 = vector.load %arg10[%c0_48, %c0_49] : memref<1x8xf32, #tpu.memory_space<vmem>>, vector<1x8xf32>
      tpu.vector_store %arg10[%c0_48, %c0_49], %70 {strides = array<i32>} : memref<1x8xf32, #tpu.memory_space<vmem>>, vector<1x8xf32>,
    } else {
    }
    %14 = vector.broadcast %7 : vector<8x1xf32> to vector<8x8xf32>
    %15 = arith.subf %3, %14 : vector<8x8xf32>
    %16 = vector.broadcast %0 : f32 to vector<8x8xf32>
    %17 = arith.addf %15, %16 : vector<8x8xf32>
    %18 = vector.broadcast %6 : vector<1x8xf32> to vector<8x8xf32>
    %19 = arith.subf %3, %18 : vector<8x8xf32>
    %20 = vector.broadcast %0 : f32 to vector<8x8xf32>
    %21 = arith.addf %19, %20 : vector<8x8xf32>
    %cst_14 = arith.constant -1.000000e+30 : f32
    %22 = vector.broadcast %cst_14 : f32 to vector<8x8xf32>
    %23 = arith.select %10, %17, %22 : vector<8x8xi1>, vector<8x8xf32>
    %cst_15 = arith.constant dense<0xFF800000> : vector<8xf32>
    %24 = vector.multi_reduction <maximumf>, %23, %cst_15 [1] : vector<8x8xf32> to vector<8xf32>
    %25 = vector.shape_cast %24 : vector<8xf32> to vector<8x1xf32>
    %26 = vector.broadcast %0 : f32 to vector<8x1xf32>
    %27 = arith.cmpf ogt, %25, %26 : vector<8x1xf32>
    %cst_16 = arith.constant 0.000000e+00 : f32
    %28 = vector.broadcast %cst_16 : f32 to vector<8x1xf32>
    %29 = arith.cmpf ogt, %25, %28 : vector<8x1xf32>
    %30 = arith.andi %27, %29 : vector<8x1xi1>
    %31 = arith.extui %30 : vector<8x1xi1> to vector<8x1xi32>
    %32 = arith.sitofp %31 : vector<8x1xi32> to vector<8x1xf32>
    %cst_17 = arith.constant 0.000000e+00 : f32
    %33 = vector.broadcast %cst_17 : f32 to vector<8x1xf32>
    %34 = arith.maximumf %25, %33 : vector<8x1xf32>
    %35 = arith.mulf %34, %32 : vector<8x1xf32>
    %cst_18 = arith.constant -1.000000e+30 : f32
    %36 = vector.broadcast %cst_18 : f32 to vector<8x8xf32>
    %37 = arith.select %10, %21, %36 : vector<8x8xi1>, vector<8x8xf32>
    %cst_19 = arith.constant dense<0xFF800000> : vector<8xf32>
    %38 = vector.multi_reduction <maximumf>, %37, %cst_19 [0] : vector<8x8xf32> to vector<8xf32>
    %39 = vector.shape_cast %38 : vector<8xf32> to vector<1x8xf32>
    %c0_20 = arith.constant 0 : index
    %c0_21 = arith.constant 0 : index
    %40 = vector.load %arg10[%c0_20, %c0_21] : memref<1x8xf32, #tpu.memory_space<vmem>>, vector<1x8xf32>
    %41 = arith.maximumf %40, %39 : vector<1x8xf32>
    %c0_22 = arith.constant 0 : index
    %c0_23 = arith.constant 0 : index
    %42 = vector.load %arg10[%c0_22, %c0_23] : memref<1x8xf32, #tpu.memory_space<vmem>>, vector<1x8xf32>
    tpu.vector_store %arg10[%c0_22, %c0_23], %41 {strides = array<i32>} : memref<1x8xf32, #tpu.memory_space<vmem>>, vector<1x8xf32>,
    %c0_24 = arith.constant 0 : index
    %c0_25 = arith.constant 0 : index
    %43 = vector.load %arg8[%c0_24, %c0_25] : memref<1x1xf32, #tpu.memory_space<vmem>>, vector<1x1xf32>
    %44 = vector.shape_cast %35 : vector<8x1xf32> to vector<1x8x1xf32>
    %cst_26 = arith.constant dense<0.000000e+00> : vector<1xf32>
    %45 = vector.multi_reduction <add>, %44, %cst_26 [1, 2] : vector<1x8x1xf32> to vector<1xf32>
    %46 = vector.shape_cast %45 : vector<1xf32> to vector<1x1x1xf32>
    %47 = vector.extract %46[0, 0, 0] : f32 from vector<1x1x1xf32>
    %48 = vector.broadcast %47 : f32 to vector<1x1xf32>
    %49 = arith.addf %43, %48 : vector<1x1xf32>
    %c0_27 = arith.constant 0 : index
    %c0_28 = arith.constant 0 : index
    %50 = vector.load %arg8[%c0_27, %c0_28] : memref<1x1xf32, #tpu.memory_space<vmem>>, vector<1x1xf32>
    tpu.vector_store %arg8[%c0_27, %c0_28], %49 {strides = array<i32>} : memref<1x1xf32, #tpu.memory_space<vmem>>, vector<1x1xf32>,
    %c0_29 = arith.constant 0 : index
    %c0_30 = arith.constant 0 : index
    %51 = vector.load %arg9[%c0_29, %c0_30] : memref<1x1xf32, #tpu.memory_space<vmem>>, vector<1x1xf32>
    %52 = vector.shape_cast %32 : vector<8x1xf32> to vector<1x8x1xf32>
    %cst_31 = arith.constant dense<0xFF800000> : vector<1xf32>
    %53 = vector.multi_reduction <maximumf>, %52, %cst_31 [1, 2] : vector<1x8x1xf32> to vector<1xf32>
    %54 = vector.shape_cast %53 : vector<1xf32> to vector<1x1x1xf32>
    %55 = vector.extract %54[0, 0, 0] : f32 from vector<1x1x1xf32>
    %56 = vector.broadcast %55 : f32 to vector<1x1xf32>
    %57 = arith.maximumf %51, %56 : vector<1x1xf32>
    %c0_32 = arith.constant 0 : index
    %c0_33 = arith.constant 0 : index
    %58 = vector.load %arg9[%c0_32, %c0_33] : memref<1x1xf32, #tpu.memory_space<vmem>>, vector<1x1xf32>
    tpu.vector_store %arg9[%c0_32, %c0_33], %57 {strides = array<i32>} : memref<1x1xf32, #tpu.memory_space<vmem>>, vector<1x1xf32>,
    %c0_i32_34 = arith.constant 0 : i32
    %59 = arith.cmpi eq, %arg0, %c0_i32_34 : i32
    %60 = arith.extui %59 : i1 to i32
    %c0_i32_35 = arith.constant 0 : i32
    %61 = arith.cmpi ne, %60, %c0_i32_35 : i32
    scf.if %61 {
      %c0_36 = arith.constant 0 : index
      %c0_37 = arith.constant 0 : index
      %62 = vector.load %arg10[%c0_36, %c0_37] : memref<1x8xf32, #tpu.memory_space<vmem>>, vector<1x8xf32>
      %63 = vector.broadcast %0 : f32 to vector<1x8xf32>
      %64 = arith.cmpf ogt, %62, %63 : vector<1x8xf32>
      %cst_38 = arith.constant 0.000000e+00 : f32
      %65 = vector.broadcast %cst_38 : f32 to vector<1x8xf32>
      %66 = arith.cmpf ogt, %62, %65 : vector<1x8xf32>
      %67 = arith.andi %64, %66 : vector<1x8xi1>
      %68 = arith.extui %67 : vector<1x8xi1> to vector<1x8xi32>
      %69 = arith.sitofp %68 : vector<1x8xi32> to vector<1x8xf32>
      %cst_39 = arith.constant 0.000000e+00 : f32
      %70 = vector.broadcast %cst_39 : f32 to vector<1x8xf32>
      %71 = arith.maximumf %62, %70 : vector<1x8xf32>
      %72 = arith.mulf %71, %69 : vector<1x8xf32>
      %73 = vector.shape_cast %72 : vector<1x8xf32> to vector<1x1x8xf32>
      %cst_40 = arith.constant dense<0.000000e+00> : vector<1xf32>
      %74 = vector.multi_reduction <add>, %73, %cst_40 [1, 2] : vector<1x1x8xf32> to vector<1xf32>
      %75 = vector.shape_cast %74 : vector<1xf32> to vector<1x1x1xf32>
      %76 = vector.extract %75[0, 0, 0] : f32 from vector<1x1x1xf32>
      %77 = vector.broadcast %76 : f32 to vector<1x1xf32>
      %78 = vector.shape_cast %69 : vector<1x8xf32> to vector<1x1x8xf32>
      %cst_41 = arith.constant dense<0xFF800000> : vector<1xf32>
      %79 = vector.multi_reduction <maximumf>, %78, %cst_41 [1, 2] : vector<1x1x8xf32> to vector<1xf32>
      %80 = vector.shape_cast %79 : vector<1xf32> to vector<1x1x1xf32>
      %81 = vector.extract %80[0, 0, 0] : f32 from vector<1x1x1xf32>
      %82 = vector.broadcast %81 : f32 to vector<1x1xf32>
      %cst_42 = arith.constant 0.000000e+00 : f32
      %83 = vector.broadcast %cst_42 : f32 to vector<1x1xf32>
      %84 = arith.cmpf ogt, %82, %83 : vector<1x1xf32>
      %85 = vector.broadcast %2 : f32 to vector<1x1xf32>
      %86 = arith.select %84, %77, %85 : vector<1x1xi1>, vector<1x1xf32>
      %c0_43 = arith.constant 0 : index
      %c0_44 = arith.constant 0 : index
      %87 = vector.load %arg9[%c0_43, %c0_44] : memref<1x1xf32, #tpu.memory_space<vmem>>, vector<1x1xf32>
      %cst_45 = arith.constant 0.000000e+00 : f32
      %88 = vector.broadcast %cst_45 : f32 to vector<1x1xf32>
      %89 = arith.cmpf ogt, %87, %88 : vector<1x1xf32>
      %c0_46 = arith.constant 0 : index
      %c0_47 = arith.constant 0 : index
      %90 = vector.load %arg8[%c0_46, %c0_47] : memref<1x1xf32, #tpu.memory_space<vmem>>, vector<1x1xf32>
      %91 = vector.broadcast %1 : f32 to vector<1x1xf32>
      %92 = arith.select %89, %90, %91 : vector<1x1xi1>, vector<1x1xf32>
      %93 = arith.addf %92, %86 : vector<1x1xf32>
      %c0_48 = arith.constant 0 : index
      %c0_49 = arith.constant 0 : index
      %94 = vector.load %arg7[%c0_48, %c0_49] : memref<1x1xf32, #tpu.memory_space<vmem>>, vector<1x1xf32>
      tpu.vector_store %arg7[%c0_48, %c0_49], %93 {strides = array<i32>} : memref<1x1xf32, #tpu.memory_space<vmem>>, vector<1x1xf32>,
    } else {
    }
    return
  }
  func.func @transform_0(%arg0: i32) -> (i32, i32) {
    %c0_i32 = arith.constant 0 : i32
    %c0_i32_0 = arith.constant 0 : i32
    %c0_i32_1 = arith.constant 0 : i32
    return %c0_i32, %c0_i32_0 : i32, i32
  }
  func.func @transform_1(%arg0: i32) -> (i32, i32) {
    %c0_i32 = arith.constant 0 : i32
    %c0_i32_0 = arith.constant 0 : i32
    %c0_i32_1 = arith.constant 0 : i32
    return %c0_i32, %c0_i32_0 : i32, i32
  }
  func.func @transform_2(%arg0: i32) -> (i32, i32) {
    %c0_i32 = arith.constant 0 : i32
    %c0_i32_0 = arith.constant 0 : i32
    return %arg0, %c0_i32 : i32, i32
  }
  func.func @transform_3(%arg0: i32) -> (i32, i32) {
    %c0_i32 = arith.constant 0 : i32
    %c0_i32_0 = arith.constant 0 : i32
    %c0_i32_1 = arith.constant 0 : i32
    return %c0_i32, %c0_i32_0 : i32, i32
  }
  func.func @transform_4(%arg0: i32) -> (i32, i32) {
    %c0_i32 = arith.constant 0 : i32
    %c0_i32_0 = arith.constant 0 : i32
    return %arg0, %c0_i32 : i32, i32
  }
  func.func @transform_5(%arg0: i32) -> (i32, i32) {
    %c0_i32 = arith.constant 0 : i32
    %c0_i32_0 = arith.constant 0 : i32
    return %arg0, %c0_i32 : i32, i32
  }
  func.func @transform_6(%arg0: i32) -> (i32, i32) {
    %c0_i32 = arith.constant 0 : i32
    %c0_i32_0 = arith.constant 0 : i32
    %c0_i32_1 = arith.constant 0 : i32
    return %c0_i32, %c0_i32_0 : i32, i32
  }
}

</mosaic_0001>

<llo_original>
// kernel: tpu_custom_call.1
$region0: #{tpu_custom_call.1}
  #allocation0 [shape = 'u32[]', space=smem, size = 0x4, offset = 0x4, fixed_abs, tag = 'smem constant byte address 0x4 - core index']
  #allocation1 [shape = 'u32[144,128]{1,0:T(1,128)}', space=vmem, size = 0x12000, scoped, tag = 'internal scratch']
  #allocation2 [shape = 'f32[1,1]{1,0:T(1,128)}', space=vmem, size = 0x200, scoped, tag = 'scratch operand']
  #allocation3 [shape = 'f32[1,1]{1,0:T(1,128)}', space=vmem, size = 0x200, scoped, tag = 'scratch operand']
  #allocation4 [shape = 'f32[1,8]{1,0:T(1,128)}', space=vmem, size = 0x200, scoped, tag = 'scratch operand']
  #allocation5 [shape = 'f32[1,8]{1,0:T(1,128)}', space=vmem, size = 0x200, scoped, tag = 'scratch operand']
  %s0 = inlined_call_operand.vmem [shape: f32[1,3], index: 0, kind: input, shape index: {}]
  %s1 = inlined_call_operand.vmem [shape: s32[1,8], index: 1, kind: input, shape index: {}]
  %s2 = inlined_call_operand.vmem [shape: s32[8,1], index: 2, kind: input, shape index: {}]
  %s3 = inlined_call_operand.vmem [shape: f32[1,8], index: 3, kind: input, shape index: {}]
  %s4 = inlined_call_operand.vmem [shape: f32[8,1], index: 4, kind: input, shape index: {}]
  %s5 = inlined_call_operand.vmem [shape: f32[8,8], index: 5, kind: input, shape index: {}]
  %s6 = inlined_call_operand.hbm [shape: f32[1,1], index: 6, kind: output, shape index: {}]
  %s7 = sld [smem:[#allocation0]]
  $region46: #{tpu_custom_call.1} parent=0
    _
  %s9 = ssub.s32 1, %s7
  %s10 = scalar_select 0, %s9, %s7
  $region1: #{tpu_custom_call.1} parent=0
    #allocation6 [shape = 'u8[512]{0}', space=smem, size = 0x200, scoped, tag = 'input window, operand 0, single buffered']
    #allocation7 [shape = 's32[1]{0}', space=sflag, size = 0x4, scoped, tag = 'scoped memory for tpu_custom_call.1']
    #allocation8 [shape = 's32[1]{0}', space=sflag, size = 0x4, scoped, tag = 'scoped memory for tpu_custom_call.1']
    #allocation9 [shape = 'u8[512]{0}', space=vmem, size = 0x400, scoped, tag = 'output window, operand 0, single buffered']
    %11 = vsyncpa [#allocation8], 0
    %12 = vsyncpa [#allocation7], 0
    // Predicated region
    $region2: #{tpu_custom_call.1} parent=1 // pred_check
      _
    $region3: #{tpu_custom_call.1} parent=1 // pred_check_branch
      %14 = sbr.rel (0) target = $region5
    $region4: #{tpu_custom_call.1} parent=1 // pred_region
      %s16 = ssub.s32 16, 16
      %17 = vsyncadd [#allocation8], %s16
      %s19 = sshll.u32 %s0, 4
      %s20 = int_to_ptr.vmem [resolvable:$true] %s19
      %22 = dma.vmem_to_smem %s20, 16, [#allocation6], [#allocation8]
    $region5: #{tpu_custom_call.1} parent=1 // pred_fallthru
      _
    // Predicated region
    $region6: #{tpu_custom_call.1} parent=1 // pred_check
      _
    $region7: #{tpu_custom_call.1} parent=1 // pred_check_branch
      %24 = sbr.rel (0) target = $region9
    $region8: #{tpu_custom_call.1} parent=1 // pred_region
      _
    $region9: #{tpu_custom_call.1} parent=1 // pred_fallthru
      _
    // Predicated region
    $region10: #{tpu_custom_call.1} parent=1 // pred_check
      _
    $region11: #{tpu_custom_call.1} parent=1 // pred_check_branch
      %26 = sbr.rel (0) target = $region13
    $region12: #{tpu_custom_call.1} parent=1 // pred_region
      _
    $region13: #{tpu_custom_call.1} parent=1 // pred_fallthru
      _
    // Predicated region
    $region14: #{tpu_custom_call.1} parent=1 // pred_check
      _
    $region15: #{tpu_custom_call.1} parent=1 // pred_check_branch
      %28 = sbr.rel (0) target = $region17
    $region16: #{tpu_custom_call.1} parent=1 // pred_region
      _
    $region17: #{tpu_custom_call.1} parent=1 // pred_fallthru
      _
    // Predicated region
    $region18: #{tpu_custom_call.1} parent=1 // pred_check
      _
    $region19: #{tpu_custom_call.1} parent=1 // pred_check_branch
      %30 = sbr.rel (0) target = $region21
    $region20: #{tpu_custom_call.1} parent=1 // pred_region
      _
    $region21: #{tpu_custom_call.1} parent=1 // pred_fallthru
      _
    // Predicated region
    $region22: #{tpu_custom_call.1} parent=1 // pred_check
      _
    $region23: #{tpu_custom_call.1} parent=1 // pred_check_branch
      %32 = sbr.rel (0) target = $region25
    $region24: #{tpu_custom_call.1} parent=1 // pred_region
      _
    $region25: #{tpu_custom_call.1} parent=1 // pred_fallthru
      _
    // Predicated region
    $region26: #{tpu_custom_call.1} parent=1 // pred_check
      _
    $region27: #{tpu_custom_call.1} parent=1 // pred_check_branch
      %34 = sbr.rel (0) target = $region29
    $region28: #{tpu_custom_call.1} parent=1 // pred_region
      %35 = dma.done [#allocation8], 16
    $region29: #{tpu_custom_call.1} parent=1 // pred_fallthru
      _
    %36 = sfence
    %s37 = sld [smem:[#allocation6]]
    %s38 = sld [smem:[#allocation6 + $0x1]]
    %s39 = sld [smem:[#allocation6 + $0x2]]
    %v40 = vld [vmem:[%s5] sm:$0xff]
    %v41 = vld [vmem:[%s1] sm:$0x1]
    %v42 = vld [vmem:[%s2] sm:$0xff]
    %v43 = vld [vmem:[%s3] sm:$0x1]
    %v44 = vld [vmem:[%s4] sm:$0xff]
    %45 = vset.pattern.permute.xlu0 0
    %46 = vperm.xlu0 %45, %v42
    %v47 = vpop.permute.xlu0 %46
    %v48 = vlaneseq
    %v49 = vshrl.u32 %v48, 7
    %v50 = vsub.s32 0, %v49
    %v51 = vrot.slane %v41, %v50
    %vm52 = vcmp.ne.s32.totalorder %v47, %v51
    %p53 = scmp.eq.s32.totalorder 0, 0
    // Predicated region
    $region30: #{tpu_custom_call.1} parent=1 // pred_check
      %p54 = pneg %p53
    $region31: #{tpu_custom_call.1} parent=1 // pred_check_branch
      %56 = sbr.rel (%p54) target = $region33
    $region32: #{tpu_custom_call.1} parent=1 // pred_region
      %vm57 = vcmask 0
      %58 = vst.msk [vmem:[#allocation9] sm:$0x1] %vm57, 0.0
      %59 = vst.msk [vmem:[#allocation2] sm:$0x1] %vm57, 0.0
      %60 = vst.msk [vmem:[#allocation3] sm:$0x1] %vm57, 0.0
      %vm61 = vcmask 57344
      %62 = vst.msk [vmem:[#allocation5] sm:$0x1] %vm61, 0.0
      %63 = vst.msk [vmem:[#allocation4] sm:$0x1] %vm61, -1e+30
    $region33: #{tpu_custom_call.1} parent=1 // pred_fallthru
      _
    %65 = vset.pattern.permute.xlu0 0
    %66 = vperm.xlu0 %65, %v44
    %v67 = vpop.permute.xlu0 %66
    %v69 = vsub.f32 %v40, %v67
    %v70 = vstv %s37
    %v71 = vadd.f32 %v69, %v70
    %v73 = vlaneseq
    %v74 = vshrl.u32 %v73, 7
    %v75 = vsub.s32 0, %v74
    %v76 = vrot.slane %v43, %v75
    %v78 = vsub.f32 %v40, %v76
    %v79 = vadd.f32 %v78, %v70
    %v80 = vsel %vm52, %v71, -1e+30
    %vm81 = vcmask 64512
    %v82 = vsel %vm81, %v80, -inf
    %83 = vmax.xlane.f32.xlu0 %v82
    %v84 = vpop.xlane.xlu0 %83
    %vm85 = vcmp.gt.f32.partialorder %v84, %v70
    %vm86 = vcmp.gt.f32.partialorder %v84, 0.0
    %vm87 = vmand %vm85, %vm86
    %v88 = vsel %vm87, 1, 0
    %v89 = vcvt.s32.f32 %v88
    %v90 = vmax.f32 %v84, 0.0
    %v91 = vmul.f32 %v90, %v89
    %v92 = vsel %vm52, %v79, -1e+30
    %v93 = vsel %vm81, %v92, -inf
    %v94 = vrot.slane %v93, 4
    %v95 = vmax.f32 %v93, %v94
    %v96 = vrot.slane %v95, 2
    %v97 = vmax.f32 %v95, %v96
    %v98 = vrot.slane %v97, 1
    %v99 = vmax.f32 %v97, %v98
    %v100 = vld [vmem:[#allocation4] sm:$0x1]
    %v101 = vmax.f32 %v100, %v99
    %vm102 = vcmask 57344
    %103 = vst.msk [vmem:[#allocation4] sm:$0x1] %vm102, %v101
    %v104 = vld [vmem:[#allocation2] sm:$0x1]
    %vm105 = vcmask 7168
    %v106 = vsel %vm105, %v91, 0.0
    %107 = vadd.xlane.f32.xlu0 %v106
    %v108 = vpop.xlane.xlu0 %107
    %v109 = vrot.slane %v108, 4
    %v110 = vadd.f32 %v108, %v109
    %v111 = vrot.slane %v110, 2
    %v112 = vadd.f32 %v110, %v111
    %v113 = vrot.slane %v112, 1
    %v114 = vadd.f32 %v112, %v113
    %s115 = vtos %v114
    %v116 = vstv %s115
    %v117 = vadd.f32 %v104, %v116
    %vm118 = vcmask 0
    %119 = vst.msk [vmem:[#allocation2] sm:$0x1] %vm118, %v117
    %v120 = vld [vmem:[#allocation3] sm:$0x1]
    %v121 = vrot.slane %v89, 4
    %v122 = vmax.f32 %v89, %v121
    %v123 = vrot.slane %v122, 2
    %v124 = vmax.f32 %v122, %v123
    %v125 = vrot.slane %v124, 1
    %v126 = vmax.f32 %v124, %v125
    %s127 = vtos %v126
    %v128 = vstv %s127
    %v129 = vmax.f32 %v120, %v128
    %130 = vst.msk [vmem:[#allocation3] sm:$0x1] %vm118, %v129
    // Predicated region
    $region34: #{tpu_custom_call.1} parent=1 // pred_check
      %p131 = pneg %p53
    $region35: #{tpu_custom_call.1} parent=1 // pred_check_branch
      %133 = sbr.rel (%p131) target = $region37
    $region36: #{tpu_custom_call.1} parent=1 // pred_region
      %v134 = vld [vmem:[#allocation4] sm:$0x1]
      %vm135 = vcmp.gt.f32.partialorder %v134, %v70
      %vm136 = vcmp.gt.f32.partialorder %v134, 0.0
      %vm137 = vmand %vm135, %vm136
      %v138 = vsel %vm137, 1, 0
      %v139 = vcvt.s32.f32 %v138
      %v140 = vmax.f32 %v134, 0.0
      %v141 = vmul.f32 %v140, %v139
      %v142 = vsel %vm102, %v141, 0.0
      %143 = vadd.xlane.f32.xlu0 %v142
      %v144 = vpop.xlane.xlu0 %143
      %v145 = vrot.slane %v144, 4
      %v146 = vadd.f32 %v144, %v145
      %v147 = vrot.slane %v146, 2
      %v148 = vadd.f32 %v146, %v147
      %v149 = vrot.slane %v148, 1
      %v150 = vadd.f32 %v148, %v149
      %s151 = vtos %v150
      %v152 = vstv %s151
      %v153 = vsel %vm102, %v139, -inf
      %154 = vmax.xlane.f32.xlu0 %v153
      %v155 = vpop.xlane.xlu0 %154
      %v156 = vrot.slane %v155, 4
      %v157 = vmax.f32 %v155, %v156
      %v158 = vrot.slane %v157, 2
      %v159 = vmax.f32 %v157, %v158
      %v160 = vrot.slane %v159, 1
      %v161 = vmax.f32 %v159, %v160
      %s162 = vtos %v161
      %v163 = vstv %s162
      %vm164 = vcmp.gt.f32.partialorder %v163, 0.0
      %v165 = vstv %s39
      %v166 = vsel %vm164, %v152, %v165
      %v167 = vld [vmem:[#allocation3] sm:$0x1]
      %vm168 = vcmp.gt.f32.partialorder %v167, 0.0
      %v169 = vld [vmem:[#allocation2] sm:$0x1]
      %v170 = vstv %s38
      %v171 = vsel %vm168, %v169, %v170
      %v172 = vadd.f32 %v171, %v166
      %173 = vst.msk [vmem:[#allocation9] sm:$0x1] %vm118, %v172
    $region37: #{tpu_custom_call.1} parent=1 // pred_fallthru
      _
    // Predicated region
    $region38: #{tpu_custom_call.1} parent=1 // pred_check
      _
    $region39: #{tpu_custom_call.1} parent=1 // pred_check_branch
      %175 = sbr.rel (0) target = $region41
    $region40: #{tpu_custom_call.1} parent=1 // pred_region
      %s177 = ssub.s32 16, 16
      %178 = vsyncadd [#allocation7], %s177
      %s180 = sshll.u32 [#allocation9], 4
      %s181 = int_to_ptr.vmem [resolvable:$true] %s180
      %183 = dma.vmem_to_hbm [thread:$0]  %s181, 16, %s6, [#allocation7]
    $region41: #{tpu_custom_call.1} parent=1 // pred_fallthru
      _
    // Predicated region
    $region42: #{tpu_custom_call.1} parent=1 // pred_check
      _
    $region43: #{tpu_custom_call.1} parent=1 // pred_check_branch
      %185 = sbr.rel (0) target = $region45
    $region44: #{tpu_custom_call.1} parent=1 // pred_region
      %186 = dma.done [#allocation7], 16
    $region45: #{tpu_custom_call.1} parent=1 // pred_fallthru
      _
    %187 = vsyncpa [#allocation7], 1
    %188 = vsyncpa [#allocation8], 1

</llo_original>
